<compile_context>
chip_gen: v7x
topology: tpu7x:2x2x1
jax: 0.10.0
libtpu: 0.0.40
codegen_flags: <defaults>
</compile_context>

<pallas_src>
import functools

import jax
import jax.numpy as jnp
import numpy as np
from jax.experimental import pallas as pl
from jax.experimental.pallas import tpu as pltpu


def _round_up(x, m):
    return ((x + m - 1) // m) * m


def _rbf_kernel(dist_ref, centers_ref, out_ref, *, inv_gap):
    # dist_ref:    (tile_e, 1)      current tile of edge distances (f32)
    # centers_ref: (1, C_pad)       all RBF centers, lane-padded (f32),
    #                               constant index_map -> resident every step
    # out_ref:     (tile_e, C_pad)  RBF expansion for this tile
    d = dist_ref[...]                       # (tile_e, 1)
    c = centers_ref[...]                    # (1, C_pad)
    diff = d - c                            # broadcast -> (tile_e, C_pad), VPU
    # exp goes to the EUP (separate bundle slot); muls stay on the VPU.
    out_ref[...] = jnp.exp(-inv_gap * diff * diff).astype(out_ref.dtype)


def rbf_layer(distances, centers, gap_eff, *, tile_e=2048, out_dtype=jnp.float32):
    """Pallas RBF expansion.

    distances: (E, 1) float array (per-edge scalar distance)
    centers:   (C,)   float array (RBF centers)
    returns:   (E, C) out_dtype array, rbf[e, c] = exp(-1/gap_eff * (d_e - c_c)^2)
    """
    E = distances.shape[0]
    C = centers.shape[0]

    # Lane-dense output: pad the center (lane) dimension to a multiple of 128.
    C_pad = _round_up(C, 128)
    # Large edge tiles amortize per-grid-step overhead; clamp for small E and
    # keep the sublane dimension a multiple of 8.
    tile = _round_up(min(tile_e, _round_up(E, 8)), 8)
    E_pad = _round_up(E, tile)

    dist = distances.astype(jnp.float32)
    if E_pad != E:
        dist = jnp.pad(dist, ((0, E_pad - E), (0, 0)))

    centers_f32 = centers.astype(jnp.float32)
    if C_pad != C:
        centers_f32 = jnp.pad(centers_f32, (0, C_pad - C))
    centers_2d = centers_f32.reshape(1, C_pad)

    inv_gap = float(1.0 / gap_eff)
    kernel = functools.partial(_rbf_kernel, inv_gap=inv_gap)

    out_bytes = E_pad * C_pad * jnp.dtype(out_dtype).itemsize
    cost = pl.CostEstimate(
        flops=3 * E_pad * C_pad,                       # sub + 2 muls per element
        transcendentals=E_pad * C_pad,                 # one exp per element
        bytes_accessed=out_bytes + E_pad * 4 + C_pad * 4,
    )

    out_padded = pl.pallas_call(
        kernel,
        out_shape=jax.ShapeDtypeStruct((E_pad, C_pad), out_dtype),
        grid_spec=pltpu.PrefetchScalarGridSpec(
            num_scalar_prefetch=0,
            grid=(E_pad // tile,),
            in_specs=[
                # Per-step tile of edge distances.
                pl.BlockSpec((tile, 1), lambda i: (i, 0)),
                # All centers; constant block index -> fetched once, not
                # re-DMA'd per grid step.
                pl.BlockSpec((1, C_pad), lambda i: (0, 0)),
            ],
            out_specs=pl.BlockSpec((tile, C_pad), lambda i: (i, 0)),
        ),
        compiler_params=pltpu.CompilerParams(
            # Edge axis is embarrassingly parallel -> shard across TCs (v7x).
            dimension_semantics=("parallel",),
        ),
        cost_estimate=cost,
    )(dist, centers_2d)

    # Drop padded edge rows and padded center lanes before returning.
    return out_padded[:E, :C]


if __name__ == "__main__":
    # Deterministic parameter setup, mirroring RBFLayer.__init__(low=0, high=30, gap=0.1)
    low, high, gap = 0.0, 30.0, 0.1
    n_centers = int(np.ceil((high - low) / gap))          # 300
    centers_np = np.linspace(low, high, n_centers).astype(np.float32)
    gap_eff = float(centers_np[1] - centers_np[0])        # 30/299

    centers = jnp.asarray(centers_np)

    # Small deterministic example: 16 edges, each with a scalar 'distance'.
    # TODO(synk): DGL graph plumbing (g.apply_edges / g.edata) has no Pallas
    # equivalent; the kernel operates on the flat per-edge distance array.
    key = jax.random.PRNGKey(0)
    E = 16
    distances = jax.random.uniform(key, (E, 1), dtype=jnp.float32,
                                   minval=low, maxval=high)

    out = rbf_layer(distances, centers, gap_eff)
    out = jax.block_until_ready(out)

    # Pure-JAX reference check
    ref = jnp.exp(-1.0 / gap_eff * (distances - centers[None, :]) ** 2)
    assert out.shape == (E, n_centers)
    np.testing.assert_allclose(np.asarray(out), np.asarray(ref), rtol=1e-5, atol=1e-6)

    print("KERNEL_OK")
</pallas_src>

<mosaic_0001>
module attributes {stable_mosaic.version = 11 : i64} {
  func.func @_rbf_kernel(%arg0: i32, %arg1: memref<16x1xf32, #tpu.memory_space<vmem>>, %arg2: memref<1x384xf32, #tpu.memory_space<vmem>>, %arg3: memref<16x384xf32, #tpu.memory_space<vmem>>) attributes {dimension_semantics = [#tpu.dimension_semantics<parallel>], iteration_bounds = array<i64: 1>, scalar_prefetch = 0 : i64, scratch_operands = 0 : i64, tpu.core_type = #tpu.core_type<tc>, window_params = [{transform_indices = @transform_0, window_bounds = array<i64: 16, 1>}, {pipeline_mode = #tpu.pipeline_mode<synchronous>, transform_indices = @transform_1, window_bounds = array<i64: 1, 384>}, {transform_indices = @transform_2, window_bounds = array<i64: 16, 384>}]} {
    %c0 = arith.constant 0 : index
    %c0_0 = arith.constant 0 : index
    %0 = vector.load %arg1[%c0, %c0_0] : memref<16x1xf32, #tpu.memory_space<vmem>>, vector<16x1xf32>
    %c0_1 = arith.constant 0 : index
    %c0_2 = arith.constant 0 : index
    %1 = vector.load %arg2[%c0_1, %c0_2] : memref<1x384xf32, #tpu.memory_space<vmem>>, vector<1x384xf32>
    %2 = vector.broadcast %0 : vector<16x1xf32> to vector<16x384xf32>
    %3 = vector.broadcast %1 : vector<1x384xf32> to vector<16x384xf32>
    %4 = arith.subf %2, %3 : vector<16x384xf32>
    %cst = arith.constant -9.96666622 : f32
    %5 = vector.broadcast %cst : f32 to vector<16x384xf32>
    %6 = arith.mulf %5, %4 : vector<16x384xf32>
    %7 = arith.mulf %6, %4 : vector<16x384xf32>
    %8 = math.exp %7 : vector<16x384xf32>
    %c0_3 = arith.constant 0 : index
    %c0_4 = arith.constant 0 : index
    %9 = vector.load %arg3[%c0_3, %c0_4] : memref<16x384xf32, #tpu.memory_space<vmem>>, vector<16x384xf32>
    tpu.vector_store %arg3[%c0_3, %c0_4], %8 {strides = array<i32>} : memref<16x384xf32, #tpu.memory_space<vmem>>, vector<16x384xf32>,
    return
  }
  func.func @transform_0(%arg0: i32) -> (i32, i32) {
    %c0_i32 = arith.constant 0 : i32
    %c0_i32_0 = arith.constant 0 : i32
    return %arg0, %c0_i32 : i32, i32
  }
  func.func @transform_1(%arg0: i32) -> (i32, i32) {
    %c0_i32 = arith.constant 0 : i32
    %c0_i32_0 = arith.constant 0 : i32
    %c0_i32_1 = arith.constant 0 : i32
    return %c0_i32, %c0_i32_0 : i32, i32
  }
  func.func @transform_2(%arg0: i32) -> (i32, i32) {
    %c0_i32 = arith.constant 0 : i32
    %c0_i32_0 = arith.constant 0 : i32
    return %arg0, %c0_i32 : i32, i32
  }
}

</mosaic_0001>

<llo_original>
// kernel: tpu_custom_call.1
$region0: #{tpu_custom_call.1}
  #allocation0 [shape = 'u32[]', space=smem, size = 0x4, offset = 0x4, fixed_abs, tag = 'smem constant byte address 0x4 - core index']
  #allocation1 [shape = 'u32[144,128]{1,0:T(1,128)}', space=vmem, size = 0x12000, scoped, tag = 'internal scratch']
  %s0 = inlined_call_operand.vmem [shape: f32[16,1], index: 0, kind: input, shape index: {}]
  %s1 = inlined_call_operand.vmem [shape: f32[1,384], index: 1, kind: input, shape index: {}]
  %s2 = inlined_call_operand.hbm [shape: f32[16,384], index: 2, kind: output, shape index: {}]
  %s3 = sld [smem:[#allocation0]]
  $region18: #{tpu_custom_call.1} parent=0
    _
  %s5 = ssub.s32 1, %s3
  %s6 = scalar_select 0, %s5, %s3
  $region1: #{tpu_custom_call.1} parent=0
    #allocation2 [shape = 'u8[24576]{0}', space=vmem, size = 0x6000, scoped, tag = 'output window, operand 0, single buffered']
    #allocation3 [shape = 's32[1]{0}', space=sflag, size = 0x4, scoped, tag = 'scoped memory for tpu_custom_call.1']
    %7 = vsyncpa [#allocation3], 0
    // Predicated region
    $region2: #{tpu_custom_call.1} parent=1 // pred_check
      _
    $region3: #{tpu_custom_call.1} parent=1 // pred_check_branch
      %9 = sbr.rel (0) target = $region5
    $region4: #{tpu_custom_call.1} parent=1 // pred_region
      _
    $region5: #{tpu_custom_call.1} parent=1 // pred_fallthru
      _
    // Predicated region
    $region6: #{tpu_custom_call.1} parent=1 // pred_check
      _
    $region7: #{tpu_custom_call.1} parent=1 // pred_check_branch
      %11 = sbr.rel (0) target = $region9
    $region8: #{tpu_custom_call.1} parent=1 // pred_region
      _
    $region9: #{tpu_custom_call.1} parent=1 // pred_fallthru
      _
    %v12 = vld [vmem:[%s0] sm:$0xff]
    %v13 = vld [vmem:[%s0 + $0x8] sm:$0xff]
    %v14 = vld [vmem:[%s1] sm:$0x7]
    %16 = vset.pattern.permute.xlu0 0
    %17 = vperm.xlu0 %16, %v12
    %v18 = vpop.permute.xlu0 %17
    %21 = vset.pattern.permute.xlu0 0
    %22 = vperm.xlu0 %21, %v13
    %v23 = vpop.permute.xlu0 %22
    %v26 = vlaneseq
    %v27 = vshrl.u32 %v26, 7
    %v28 = vsub.s32 0, %v27
    %v29 = vrot.slane %v14, %v28
    %v30 = vlaneseq
    %v31 = vshrl.u32 %v30, 7
    %v32 = vsub.s32 1, %v31
    %v33 = vrot.slane %v14, %v32
    %v34 = vlaneseq
    %v35 = vshrl.u32 %v34, 7
    %v36 = vsub.s32 2, %v35
    %v37 = vrot.slane %v14, %v36
    %v41 = vsub.f32 %v18, %v29
    %v42 = vsub.f32 %v18, %v33
    %v43 = vsub.f32 %v18, %v37
    %v44 = vsub.f32 %v23, %v29
    %v45 = vsub.f32 %v23, %v33
    %v46 = vsub.f32 %v23, %v37
    %v47 = vmul.f32 %v41, -9.966666
    %v48 = vmul.f32 %v42, -9.966666
    %v49 = vmul.f32 %v43, -9.966666
    %v50 = vmul.f32 %v44, -9.966666
    %v51 = vmul.f32 %v45, -9.966666
    %v52 = vmul.f32 %v46, -9.966666
    %v53 = vmul.f32 %v47, %v41
    %v54 = vmul.f32 %v48, %v42
    %v55 = vmul.f32 %v49, %v43
    %v56 = vmul.f32 %v50, %v44
    %v57 = vmul.f32 %v51, %v45
    %v58 = vmul.f32 %v52, %v46
    %v59 = vmul.f32 %v53, 1.442695
    %v60 = vpow.pop %v59
    %v61 = vmul.f32 %v54, 1.442695
    %v62 = vpow.pop %v61
    %v63 = vmul.f32 %v55, 1.442695
    %v64 = vpow.pop %v63
    %v65 = vmul.f32 %v56, 1.442695
    %v66 = vpow.pop %v65
    %v67 = vmul.f32 %v57, 1.442695
    %v68 = vpow.pop %v67
    %v69 = vmul.f32 %v58, 1.442695
    %v70 = vpow.pop %v69
    %71 = vst [vmem:[#allocation2] sm:$0xff] %v60
    %72 = vst [vmem:[#allocation2 + $0x8] sm:$0xff] %v62
    %73 = vst [vmem:[#allocation2 + $0x10] sm:$0xff] %v64
    %74 = vst [vmem:[#allocation2 + $0x18] sm:$0xff] %v66
    %75 = vst [vmem:[#allocation2 + $0x20] sm:$0xff] %v68
    %76 = vst [vmem:[#allocation2 + $0x28] sm:$0xff] %v70
    // Predicated region
    $region10: #{tpu_custom_call.1} parent=1 // pred_check
      _
    $region11: #{tpu_custom_call.1} parent=1 // pred_check_branch
      %78 = sbr.rel (0) target = $region13
    $region12: #{tpu_custom_call.1} parent=1 // pred_region
      %s80 = ssub.s32 768, 768
      %81 = vsyncadd [#allocation3], %s80
      %s82 = sshll.u32 [#allocation2], 4
      %s83 = int_to_ptr.vmem [resolvable:$true] %s82
      %88 = dma.vmem_to_hbm [thread:$0]  %s83, 768, %s2, [#allocation3], 384, 384, 24
    $region13: #{tpu_custom_call.1} parent=1 // pred_fallthru
      _
    // Predicated region
    $region14: #{tpu_custom_call.1} parent=1 // pred_check
      _
    $region15: #{tpu_custom_call.1} parent=1 // pred_check_branch
      %90 = sbr.rel (0) target = $region17
    $region16: #{tpu_custom_call.1} parent=1 // pred_region
      %91 = dma.done [#allocation3], 768
    $region17: #{tpu_custom_call.1} parent=1 // pred_fallthru
      _
    %92 = vsyncpa [#allocation3], 1

</llo_original>
